<compile_context>
chip_gen: v6e
topology: v6e:2x2x1
jax: 0.10.0
libtpu: 0.0.40
codegen_flags: <defaults>
</compile_context>

<pallas_src>
import math

import jax
import jax.numpy as jnp
import numpy as np
from jax.experimental import pallas as pl
from jax.experimental.pallas import tpu as pltpu

# ---- config (mirrors config.model.graph_encoder.* / config.model.nonlinearity) ----
B = 2        # batch
N = 8        # graph size (adj.size(1)), also num_vertices for pooling
F0 = 16      # initial_hidden
H = 32       # gcn_hidden == d_model
L = 3        # gcn_layers
LH = 32      # linear_hidden
ACT = "swish"  # config.model.nonlinearity
BN = B * N   # flattened node count


def _act(x):
    if ACT == "swish":
        return x * jax.nn.sigmoid(x)
    if ACT == "relu":
        return jnp.maximum(x, 0.0)
    if ACT == "lrelu":
        return jnp.where(x > 0, x, 0.2 * x)
    if ACT == "elu":
        return jnp.where(x > 0, x, jnp.exp(x) - 1.0)
    if ACT == "tanh":
        return jnp.tanh(x)
    raise NotImplementedError("activation function does not exist!")


def get_timestep_embedding(timesteps, embedding_dim, max_positions=10000):
    # pure-elementwise glue; lives inside the jitted wrapper (XLA fuses it)
    half_dim = embedding_dim // 2
    emb = math.log(max_positions) / (half_dim - 1)
    emb = jnp.exp(jnp.arange(half_dim, dtype=jnp.float32) * -emb)
    emb = timesteps.astype(jnp.float32)[:, None] * emb[None, :]
    emb = jnp.concatenate([jnp.sin(emb), jnp.cos(emb)], axis=1)
    if embedding_dim % 2 == 1:
        emb = jnp.pad(emb, ((0, 0), (0, 1)))
    return emb


# ------------------------------ Pallas kernel -------------------------------
def predictor_kernel(xt_ref, adj_ref, wg_ref, t1_ref, t2_ref, out_ref):
    # xt_ref  (BN+B, H)   rows [0:BN]   : flattened node features (F0->H zero-padded)
    #                     rows [BN:BN+B]: sinusoidal timestep embedding
    # adj_ref (2, BN, BN) block-diag over batch: [norm_adj, inv_norm_adj]
    # wg_ref  (L, 2, H, H) per-layer [W1, W2] (layer-0 rows zero-padded F0->H)
    # t1_ref  (H+1, 4H)   [timeEmb1.W^T ; timeEmb1.b]
    # t2_ref  (4H+2, H)   [timeEmb2.W^T ; timeEmb2.b ; folded fc2@fc1 head row]
    h = xt_ref[:BN, :]                                     # (BN, H)
    na = adj_ref[0]                                        # (BN, BN)
    ina = adj_ref[1]                                       # (BN, BN)

    for l in range(L):                                     # static unrolled GCN stack
        # two independent feature matmuls (no lane-slice / sublane-concat relayout)
        xw1 = jnp.dot(h, wg_ref[l, 0], preferred_element_type=jnp.float32)   # (BN, H)
        xw2 = jnp.dot(h, wg_ref[l, 1], preferred_element_type=jnp.float32)   # (BN, H)
        # block-diag adjacency matmuls handle the whole batch in one push each
        y1 = jnp.maximum(jnp.dot(na, xw1, preferred_element_type=jnp.float32), 0.0)
        y2 = jnp.maximum(jnp.dot(ina, xw2, preferred_element_type=jnp.float32), 0.0)
        h = 0.5 * (y1 + y2)                                # (BN, H)
        # Dropout(0.1) is identity in eval mode.

    # graph_pooling: per-graph mean over nodes (num_vertices == N for every graph)
    # N == 8 == one f32 sublane tile -> layout-aligned reshape + sublane reduce (XLU)
    pooled = h.reshape(B, N, H).sum(axis=1) * (1.0 / N)    # (B, H)

    # time-embedding MLP, batched: Linear(H,4H) -> act -> Linear(4H,H)
    tsin = xt_ref[BN:BN + B, :]                            # (B, H)
    e1 = jnp.dot(tsin, t1_ref[:H, :], preferred_element_type=jnp.float32) \
        + t1_ref[H:H + 1, :]                               # (B, 4H)
    e1 = _act(e1)
    e2 = jnp.dot(e1, t2_ref[:4 * H, :], preferred_element_type=jnp.float32) \
        + t2_ref[4 * H:4 * H + 1, :]                       # (B, H)

    feat = pooled + e2                                     # (B, H)

    # fc1 @ fc2 folded into a single (1, H) head row; VPU mul + lane reduce
    w_head = t2_ref[4 * H + 1:4 * H + 2, :]                # (1, H)
    out_ref[...] = jnp.sum(feat * w_head, axis=-1, keepdims=True)   # (B, 1)


# ------------------------------ wrapper (one jit) ----------------------------
@jax.jit
def neural_predictor(x, time_cond, adj, wg, t1_slab, t2_slab):
    # sinusoidal timestep embedding
    tsin = get_timestep_embedding(time_cond, H)                       # (B, H)

    # pad layer-0 feature dim F0 -> H with zeros (weights zero-padded too -> exact)
    x_pad = jnp.zeros((B, N, H), jnp.float32).at[:, :, :F0].set(x)
    xt = jnp.concatenate([x_pad.reshape(BN, H), tsin], axis=0)        # (BN+B, H)

    # adjacency normalisations (cheap, fused by XLA under this jit)
    eye = jnp.eye(N, dtype=adj.dtype)
    a = adj + eye[None]
    a1 = a / a.sum(-1, keepdims=True)                  # adj_with_diag = normalize_adj(adj+I)
    na = a1 / a1.sum(-1, keepdims=True)                # normalize_adj(a1)
    a1t = jnp.swapaxes(a1, 1, 2)
    ina = a1t / a1t.sum(-1, keepdims=True)             # normalize_adj(a1^T)

    # vectorized block-diagonal assembly (no Python .at[].set loop)
    eye_b = jnp.eye(B, dtype=jnp.float32)
    na_bd = jnp.einsum("bij,bc->bicj", na, eye_b).reshape(BN, BN)
    ina_bd = jnp.einsum("bij,bc->bicj", ina, eye_b).reshape(BN, BN)
    adj_stack = jnp.stack([na_bd, ina_bd])                            # (2, BN, BN)

    vmem = pltpu.MemorySpace.VMEM
    out = pl.pallas_call(
        predictor_kernel,
        out_shape=jax.ShapeDtypeStruct((B, 1), jnp.float32),
        in_specs=[pl.BlockSpec(memory_space=vmem)] * 5,
        out_specs=pl.BlockSpec(memory_space=vmem),
    )(xt, adj_stack, wg, t1_slab, t2_slab)
    return out


# ------------------------- params & reference --------------------------------
def make_params(key):
    ks = jax.random.split(key, 2 * L + 6)
    ki = iter(range(len(ks)))

    def xavier(k, shape):
        bound = math.sqrt(6.0 / (shape[0] + shape[1]))
        return jax.random.uniform(k, shape, jnp.float32, -bound, bound)

    def linear_w(k, shape):  # torch Linear-ish: U(-1/sqrt(fan_in), +)
        bound = 1.0 / math.sqrt(shape[1])
        return jax.random.uniform(k, shape, jnp.float32, -bound, bound)

    gcn_w1, gcn_w2 = [], []
    for l in range(L):
        fin = F0 if l == 0 else H
        gcn_w1.append(xavier(ks[next(ki)], (fin, H)))
        gcn_w2.append(xavier(ks[next(ki)], (fin, H)))

    def pad0(w):  # zero-pad layer-0 weight rows F0 -> H (no-op for l > 0)
        return jnp.zeros((H, H), jnp.float32).at[:w.shape[0], :].set(w)

    # per-layer [W1, W2] stacked -> (L, 2, H, H)
    wg = jnp.stack([jnp.stack([pad0(w1), pad0(w2)])
                    for w1, w2 in zip(gcn_w1, gcn_w2)])

    wt1 = linear_w(ks[next(ki)], (4 * H, H)); bt1 = linear_w(ks[next(ki)], (1, 4 * H))[0]
    wt2 = linear_w(ks[next(ki)], (H, 4 * H)); bt2 = linear_w(ks[next(ki)], (1, H))[0]
    wfc1 = linear_w(ks[next(ki)], (LH, H))
    wfc2 = linear_w(ks[next(ki)], (1, LH))

    # packed slabs (cuts operand count / DMA prologue)
    t1_slab = jnp.concatenate([wt1.T, bt1[None, :]], axis=0)          # (H+1, 4H)
    w_head_row = wfc2 @ wfc1                                          # (1, H) exact fold
    t2_slab = jnp.concatenate([wt2.T, bt2[None, :], w_head_row], axis=0)  # (4H+2, H)

    return dict(
        gcn_w1=gcn_w1, gcn_w2=gcn_w2, wg=wg,
        wt1=wt1, bt1=bt1, wt2=wt2, bt2=bt2, wfc1=wfc1, wfc2=wfc2,
        t1_slab=t1_slab, t2_slab=t2_slab,
    )


def reference(x, time_cond, adj, p):
    emb = get_timestep_embedding(time_cond, H)
    emb = emb @ p["wt1"].T + p["bt1"]
    emb = _act(emb)
    emb = emb @ p["wt2"].T + p["bt2"]

    a = adj + jnp.eye(N, dtype=adj.dtype)[None]
    a1 = a / a.sum(-1, keepdims=True)
    na = a1 / a1.sum(-1, keepdims=True)
    a1t = jnp.swapaxes(a1, 1, 2)
    ina = a1t / a1t.sum(-1, keepdims=True)

    out = x
    for l in range(L):
        o1 = jax.nn.relu(jnp.einsum("bij,bjh->bih", na, out @ p["gcn_w1"][l]))
        o2 = jax.nn.relu(jnp.einsum("bij,bjh->bih", ina, out @ p["gcn_w2"][l]))
        out = (o1 + o2) / 2.0
    pooled = out.sum(1) / N
    feat = pooled + emb
    return (feat @ p["wfc1"].T) @ p["wfc2"].T


# ---------------------------------- main -------------------------------------
if __name__ == "__main__":
    key = jax.random.PRNGKey(0)
    kx, kt, ka, kp = jax.random.split(key, 4)

    X = jax.random.normal(kx, (B, N, F0), jnp.float32)
    time_cond = jax.random.uniform(kt, (B,), jnp.float32, 0.0, 1000.0)
    maskX = jax.random.uniform(ka, (B, N, N), jnp.float32)     # adjacency

    params = make_params(kp)

    out = neural_predictor(X, time_cond, maskX,
                           params["wg"], params["t1_slab"], params["t2_slab"])
    out = jax.block_until_ready(out)

    ref = reference(X, time_cond, maskX, params)
    assert out.shape == (B, 1)
    np.testing.assert_allclose(np.asarray(out), np.asarray(ref), rtol=1e-5, atol=1e-5)

    print("KERNEL_OK")
</pallas_src>

<mosaic_0001>
module attributes {stable_mosaic.version = 11 : i64} {
  func.func @predictor_kernel(%arg0: memref<18x32xf32, #tpu.memory_space<vmem>>, %arg1: memref<2x16x16xf32, #tpu.memory_space<vmem>>, %arg2: memref<3x2x32x32xf32, #tpu.memory_space<vmem>>, %arg3: memref<33x128xf32, #tpu.memory_space<vmem>>, %arg4: memref<130x32xf32, #tpu.memory_space<vmem>>, %arg5: memref<2x1xf32, #tpu.memory_space<vmem>>) attributes {dimension_semantics = [], scalar_prefetch = 0 : i64, scratch_operands = 0 : i64, tpu.core_type = #tpu.core_type<tc>} {
    %c0 = arith.constant 0 : index
    %c0_0 = arith.constant 0 : index
    %0 = vector.load %arg0[%c0, %c0_0] : memref<18x32xf32, #tpu.memory_space<vmem>>, vector<16x32xf32>
    %c0_1 = arith.constant 0 : index
    %c0_2 = arith.constant 0 : index
    %c0_3 = arith.constant 0 : index
    %1 = vector.load %arg1[%c0_1, %c0_2, %c0_3] : memref<2x16x16xf32, #tpu.memory_space<vmem>>, vector<1x16x16xf32>
    %2 = vector.shape_cast %1 : vector<1x16x16xf32> to vector<16x16xf32>
    %c1 = arith.constant 1 : index
    %c0_4 = arith.constant 0 : index
    %c0_5 = arith.constant 0 : index
    %3 = vector.load %arg1[%c1, %c0_4, %c0_5] : memref<2x16x16xf32, #tpu.memory_space<vmem>>, vector<1x16x16xf32>
    %4 = vector.shape_cast %3 : vector<1x16x16xf32> to vector<16x16xf32>
    %c0_6 = arith.constant 0 : index
    %c0_7 = arith.constant 0 : index
    %c0_8 = arith.constant 0 : index
    %c0_9 = arith.constant 0 : index
    %5 = vector.load %arg2[%c0_6, %c0_7, %c0_8, %c0_9] : memref<3x2x32x32xf32, #tpu.memory_space<vmem>>, vector<1x1x32x32xf32>
    %6 = vector.shape_cast %5 : vector<1x1x32x32xf32> to vector<32x32xf32>
    %cst = arith.constant dense<0.000000e+00> : vector<16x32xf32>
    %7 = tpu.matmul %0, %6, %cst {dimension_numbers = #tpu.dot_dimension_numbers<[1], [0], [0], [1], [0, 0, 1, 1], [], []>} : vector<16x32xf32>, vector<32x32xf32>, vector<16x32xf32> -> vector<16x32xf32>
    %c0_10 = arith.constant 0 : index
    %c1_11 = arith.constant 1 : index
    %c0_12 = arith.constant 0 : index
    %c0_13 = arith.constant 0 : index
    %8 = vector.load %arg2[%c0_10, %c1_11, %c0_12, %c0_13] : memref<3x2x32x32xf32, #tpu.memory_space<vmem>>, vector<1x1x32x32xf32>
    %9 = vector.shape_cast %8 : vector<1x1x32x32xf32> to vector<32x32xf32>
    %cst_14 = arith.constant dense<0.000000e+00> : vector<16x32xf32>
    %10 = tpu.matmul %0, %9, %cst_14 {dimension_numbers = #tpu.dot_dimension_numbers<[1], [0], [0], [1], [0, 0, 1, 1], [], []>} : vector<16x32xf32>, vector<32x32xf32>, vector<16x32xf32> -> vector<16x32xf32>
    %cst_15 = arith.constant dense<0.000000e+00> : vector<16x32xf32>
    %11 = tpu.matmul %2, %7, %cst_15 {dimension_numbers = #tpu.dot_dimension_numbers<[1], [0], [0], [1], [0, 0, 1, 1], [], []>} : vector<16x16xf32>, vector<16x32xf32>, vector<16x32xf32> -> vector<16x32xf32>
    %cst_16 = arith.constant 0.000000e+00 : f32
    %12 = vector.broadcast %cst_16 : f32 to vector<16x32xf32>
    %13 = arith.maximumf %11, %12 : vector<16x32xf32>
    %cst_17 = arith.constant dense<0.000000e+00> : vector<16x32xf32>
    %14 = tpu.matmul %4, %10, %cst_17 {dimension_numbers = #tpu.dot_dimension_numbers<[1], [0], [0], [1], [0, 0, 1, 1], [], []>} : vector<16x16xf32>, vector<16x32xf32>, vector<16x32xf32> -> vector<16x32xf32>
    %cst_18 = arith.constant 0.000000e+00 : f32
    %15 = vector.broadcast %cst_18 : f32 to vector<16x32xf32>
    %16 = arith.maximumf %14, %15 : vector<16x32xf32>
    %17 = arith.addf %13, %16 : vector<16x32xf32>
    %cst_19 = arith.constant 5.000000e-01 : f32
    %18 = vector.broadcast %cst_19 : f32 to vector<16x32xf32>
    %19 = arith.mulf %18, %17 : vector<16x32xf32>
    %c1_20 = arith.constant 1 : index
    %c0_21 = arith.constant 0 : index
    %c0_22 = arith.constant 0 : index
    %c0_23 = arith.constant 0 : index
    %20 = vector.load %arg2[%c1_20, %c0_21, %c0_22, %c0_23] : memref<3x2x32x32xf32, #tpu.memory_space<vmem>>, vector<1x1x32x32xf32>
    %21 = vector.shape_cast %20 : vector<1x1x32x32xf32> to vector<32x32xf32>
    %cst_24 = arith.constant dense<0.000000e+00> : vector<16x32xf32>
    %22 = tpu.matmul %19, %21, %cst_24 {dimension_numbers = #tpu.dot_dimension_numbers<[1], [0], [0], [1], [0, 0, 1, 1], [], []>} : vector<16x32xf32>, vector<32x32xf32>, vector<16x32xf32> -> vector<16x32xf32>
    %c1_25 = arith.constant 1 : index
    %c1_26 = arith.constant 1 : index
    %c0_27 = arith.constant 0 : index
    %c0_28 = arith.constant 0 : index
    %23 = vector.load %arg2[%c1_25, %c1_26, %c0_27, %c0_28] : memref<3x2x32x32xf32, #tpu.memory_space<vmem>>, vector<1x1x32x32xf32>
    %24 = vector.shape_cast %23 : vector<1x1x32x32xf32> to vector<32x32xf32>
    %cst_29 = arith.constant dense<0.000000e+00> : vector<16x32xf32>
    %25 = tpu.matmul %19, %24, %cst_29 {dimension_numbers = #tpu.dot_dimension_numbers<[1], [0], [0], [1], [0, 0, 1, 1], [], []>} : vector<16x32xf32>, vector<32x32xf32>, vector<16x32xf32> -> vector<16x32xf32>
    %cst_30 = arith.constant dense<0.000000e+00> : vector<16x32xf32>
    %26 = tpu.matmul %2, %22, %cst_30 {dimension_numbers = #tpu.dot_dimension_numbers<[1], [0], [0], [1], [0, 0, 1, 1], [], []>} : vector<16x16xf32>, vector<16x32xf32>, vector<16x32xf32> -> vector<16x32xf32>
    %cst_31 = arith.constant 0.000000e+00 : f32
    %27 = vector.broadcast %cst_31 : f32 to vector<16x32xf32>
    %28 = arith.maximumf %26, %27 : vector<16x32xf32>
    %cst_32 = arith.constant dense<0.000000e+00> : vector<16x32xf32>
    %29 = tpu.matmul %4, %25, %cst_32 {dimension_numbers = #tpu.dot_dimension_numbers<[1], [0], [0], [1], [0, 0, 1, 1], [], []>} : vector<16x16xf32>, vector<16x32xf32>, vector<16x32xf32> -> vector<16x32xf32>
    %cst_33 = arith.constant 0.000000e+00 : f32
    %30 = vector.broadcast %cst_33 : f32 to vector<16x32xf32>
    %31 = arith.maximumf %29, %30 : vector<16x32xf32>
    %32 = arith.addf %28, %31 : vector<16x32xf32>
    %cst_34 = arith.constant 5.000000e-01 : f32
    %33 = vector.broadcast %cst_34 : f32 to vector<16x32xf32>
    %34 = arith.mulf %33, %32 : vector<16x32xf32>
    %c2 = arith.constant 2 : index
    %c0_35 = arith.constant 0 : index
    %c0_36 = arith.constant 0 : index
    %c0_37 = arith.constant 0 : index
    %35 = vector.load %arg2[%c2, %c0_35, %c0_36, %c0_37] : memref<3x2x32x32xf32, #tpu.memory_space<vmem>>, vector<1x1x32x32xf32>
    %36 = vector.shape_cast %35 : vector<1x1x32x32xf32> to vector<32x32xf32>
    %cst_38 = arith.constant dense<0.000000e+00> : vector<16x32xf32>
    %37 = tpu.matmul %34, %36, %cst_38 {dimension_numbers = #tpu.dot_dimension_numbers<[1], [0], [0], [1], [0, 0, 1, 1], [], []>} : vector<16x32xf32>, vector<32x32xf32>, vector<16x32xf32> -> vector<16x32xf32>
    %c2_39 = arith.constant 2 : index
    %c1_40 = arith.constant 1 : index
    %c0_41 = arith.constant 0 : index
    %c0_42 = arith.constant 0 : index
    %38 = vector.load %arg2[%c2_39, %c1_40, %c0_41, %c0_42] : memref<3x2x32x32xf32, #tpu.memory_space<vmem>>, vector<1x1x32x32xf32>
    %39 = vector.shape_cast %38 : vector<1x1x32x32xf32> to vector<32x32xf32>
    %cst_43 = arith.constant dense<0.000000e+00> : vector<16x32xf32>
    %40 = tpu.matmul %34, %39, %cst_43 {dimension_numbers = #tpu.dot_dimension_numbers<[1], [0], [0], [1], [0, 0, 1, 1], [], []>} : vector<16x32xf32>, vector<32x32xf32>, vector<16x32xf32> -> vector<16x32xf32>
    %cst_44 = arith.constant dense<0.000000e+00> : vector<16x32xf32>
    %41 = tpu.matmul %2, %37, %cst_44 {dimension_numbers = #tpu.dot_dimension_numbers<[1], [0], [0], [1], [0, 0, 1, 1], [], []>} : vector<16x16xf32>, vector<16x32xf32>, vector<16x32xf32> -> vector<16x32xf32>
    %cst_45 = arith.constant 0.000000e+00 : f32
    %42 = vector.broadcast %cst_45 : f32 to vector<16x32xf32>
    %43 = arith.maximumf %41, %42 : vector<16x32xf32>
    %cst_46 = arith.constant dense<0.000000e+00> : vector<16x32xf32>
    %44 = tpu.matmul %4, %40, %cst_46 {dimension_numbers = #tpu.dot_dimension_numbers<[1], [0], [0], [1], [0, 0, 1, 1], [], []>} : vector<16x16xf32>, vector<16x32xf32>, vector<16x32xf32> -> vector<16x32xf32>
    %cst_47 = arith.constant 0.000000e+00 : f32
    %45 = vector.broadcast %cst_47 : f32 to vector<16x32xf32>
    %46 = arith.maximumf %44, %45 : vector<16x32xf32>
    %47 = arith.addf %43, %46 : vector<16x32xf32>
    %cst_48 = arith.constant 5.000000e-01 : f32
    %48 = vector.broadcast %cst_48 : f32 to vector<16x32xf32>
    %49 = arith.mulf %48, %47 : vector<16x32xf32>
    %50 = vector.shape_cast %49 : vector<16x32xf32> to vector<2x8x32xf32>
    %cst_49 = arith.constant dense<0.000000e+00> : vector<2x32xf32>
    %51 = vector.multi_reduction <add>, %50, %cst_49 [1] : vector<2x8x32xf32> to vector<2x32xf32>
    %cst_50 = arith.constant 1.250000e-01 : f32
    %52 = vector.broadcast %cst_50 : f32 to vector<2x32xf32>
    %53 = arith.mulf %51, %52 : vector<2x32xf32>
    %c16 = arith.constant 16 : index
    %c0_51 = arith.constant 0 : index
    %54 = vector.load %arg0[%c16, %c0_51] : memref<18x32xf32, #tpu.memory_space<vmem>>, vector<2x32xf32>
    %c0_52 = arith.constant 0 : index
    %c0_53 = arith.constant 0 : index
    %55 = vector.load %arg3[%c0_52, %c0_53] : memref<33x128xf32, #tpu.memory_space<vmem>>, vector<32x128xf32>
    %cst_54 = arith.constant dense<0.000000e+00> : vector<2x128xf32>
    %56 = tpu.matmul %54, %55, %cst_54 {dimension_numbers = #tpu.dot_dimension_numbers<[1], [0], [0], [1], [0, 0, 1, 1], [], []>} : vector<2x32xf32>, vector<32x128xf32>, vector<2x128xf32> -> vector<2x128xf32>
    %c32 = arith.constant 32 : index
    %c0_55 = arith.constant 0 : index
    %57 = vector.load %arg3[%c32, %c0_55] : memref<33x128xf32, #tpu.memory_space<vmem>>, vector<1x128xf32>
    %58 = vector.broadcast %57 : vector<1x128xf32> to vector<2x128xf32>
    %59 = arith.addf %56, %58 : vector<2x128xf32>
    %60 = arith.negf %59 : vector<2x128xf32>
    %61 = math.exp %60 : vector<2x128xf32>
    %cst_56 = arith.constant 1.000000e+00 : f32
    %62 = vector.broadcast %cst_56 : f32 to vector<2x128xf32>
    %63 = arith.addf %62, %61 : vector<2x128xf32>
    %64 = arith.divf %62, %63 : vector<2x128xf32>
    %65 = arith.mulf %59, %64 : vector<2x128xf32>
    %c0_57 = arith.constant 0 : index
    %c0_58 = arith.constant 0 : index
    %66 = vector.load %arg4[%c0_57, %c0_58] : memref<130x32xf32, #tpu.memory_space<vmem>>, vector<128x32xf32>
    %cst_59 = arith.constant dense<0.000000e+00> : vector<2x32xf32>
    %67 = tpu.matmul %65, %66, %cst_59 {dimension_numbers = #tpu.dot_dimension_numbers<[1], [0], [0], [1], [0, 0, 1, 1], [], []>} : vector<2x128xf32>, vector<128x32xf32>, vector<2x32xf32> -> vector<2x32xf32>
    %c128 = arith.constant 128 : index
    %c0_60 = arith.constant 0 : index
    %68 = vector.load %arg4[%c128, %c0_60] : memref<130x32xf32, #tpu.memory_space<vmem>>, vector<1x32xf32>
    %69 = vector.broadcast %68 : vector<1x32xf32> to vector<2x32xf32>
    %70 = arith.addf %67, %69 : vector<2x32xf32>
    %71 = arith.addf %53, %70 : vector<2x32xf32>
    %c129 = arith.constant 129 : index
    %c0_61 = arith.constant 0 : index
    %72 = vector.load %arg4[%c129, %c0_61] : memref<130x32xf32, #tpu.memory_space<vmem>>, vector<1x32xf32>
    %73 = vector.broadcast %72 : vector<1x32xf32> to vector<2x32xf32>
    %74 = arith.mulf %71, %73 : vector<2x32xf32>
    %cst_62 = arith.constant dense<0.000000e+00> : vector<2xf32>
    %75 = vector.multi_reduction <add>, %74, %cst_62 [1] : vector<2x32xf32> to vector<2xf32>
    %76 = vector.shape_cast %75 : vector<2xf32> to vector<2x1xf32>
    %c0_63 = arith.constant 0 : index
    %c0_64 = arith.constant 0 : index
    %77 = vector.load %arg5[%c0_63, %c0_64] : memref<2x1xf32, #tpu.memory_space<vmem>>, vector<2x1xf32>
    tpu.vector_store %arg5[%c0_63, %c0_64], %76 {strides = array<i32>} : memref<2x1xf32, #tpu.memory_space<vmem>>, vector<2x1xf32>,
    return
  }
}

</mosaic_0001>

<llo_original>
// kernel: neural_predictor.1
$region0: #{neural_predictor.1}
  #allocation0 [shape = 'u32[]', space=smem, size = 0x4, offset = 0x4, fixed_abs, tag = 'smem constant byte address 0x4 - core index']
  #allocation1 [shape = 'u32[144,128]{1,0:T(1,128)}', space=vmem, size = 0x12000, scoped, tag = 'internal scratch']
  %s0 = inlined_call_operand.vmem [shape: f32[18,32], index: 0, kind: input, shape index: {}]
  %s1 = inlined_call_operand.vmem [shape: f32[2,16,16], index: 1, kind: input, shape index: {}]
  %s2 = inlined_call_operand.vmem [shape: f32[3,2,32,32], index: 2, kind: input, shape index: {}]
  %s3 = inlined_call_operand.vmem [shape: f32[33,128], index: 3, kind: input, shape index: {}]
  %s4 = inlined_call_operand.vmem [shape: f32[130,32], index: 4, kind: input, shape index: {}]
  %s5 = inlined_call_operand.vmem [shape: f32[2,1], index: 5, kind: output, shape index: {}]
  %s6 = sld [smem:[#allocation0]]
  $region30: #{neural_predictor.1} parent=0
    _
  %s8 = ssub.s32 1, %s6
  %s9 = scalar_select 0, %s8, %s6
  // Predicated region
  $region2: #{neural_predictor.1} parent=0 // pred_check
    _
  $region3: #{neural_predictor.1} parent=0 // pred_check_branch
    %11 = sbr.rel (0) target = $region5
  $region4: #{neural_predictor.1} parent=0 // pred_region
    _
  $region5: #{neural_predictor.1} parent=0 // pred_fallthru
    _
  // Predicated region
  $region6: #{neural_predictor.1} parent=0 // pred_check
    _
  $region7: #{neural_predictor.1} parent=0 // pred_check_branch
    %13 = sbr.rel (0) target = $region9
  $region8: #{neural_predictor.1} parent=0 // pred_region
    _
  $region9: #{neural_predictor.1} parent=0 // pred_fallthru
    _
  // Predicated region
  $region10: #{neural_predictor.1} parent=0 // pred_check
    _
  $region11: #{neural_predictor.1} parent=0 // pred_check_branch
    %15 = sbr.rel (0) target = $region13
  $region12: #{neural_predictor.1} parent=0 // pred_region
    _
  $region13: #{neural_predictor.1} parent=0 // pred_fallthru
    _
  // Predicated region
  $region14: #{neural_predictor.1} parent=0 // pred_check
    _
  $region15: #{neural_predictor.1} parent=0 // pred_check_branch
    %17 = sbr.rel (0) target = $region17
  $region16: #{neural_predictor.1} parent=0 // pred_region
    _
  $region17: #{neural_predictor.1} parent=0 // pred_fallthru
    _
  // Predicated region
  $region18: #{neural_predictor.1} parent=0 // pred_check
    _
  $region19: #{neural_predictor.1} parent=0 // pred_check_branch
    %19 = sbr.rel (0) target = $region21
  $region20: #{neural_predictor.1} parent=0 // pred_region
    _
  $region21: #{neural_predictor.1} parent=0 // pred_fallthru
    _
  %v20 = vld [vmem:[%s0] sm:$0xff]
  %v21 = vld [vmem:[%s0 + $0x8] sm:$0xff]
  %v22 = vld [vmem:[%s1] sm:$0xff]
  %v23 = vld [vmem:[%s1 + $0x8] sm:$0xff]
  %s24 = scalar_lea.vmem %s1, 16
  %v25 = vld [vmem:[%s24] sm:$0xff]
  %v26 = vld [vmem:[%s24 + $0x8] sm:$0xff]
  %v27 = vld [vmem:[%s2] sm:$0xff]
  %v28 = vld [vmem:[%s2 + $0x8] sm:$0xff]
  %v29 = vld [vmem:[%s2 + $0x10] sm:$0xff]
  %v30 = vld [vmem:[%s2 + $0x18] sm:$0xff]
  %vm31 = vcmask 261120
  %v33 = vsel %vm31, %v20, 0
  %v36 = vsel %vm31, %v21, 0
  %38 = vmatprep.subr.mxu0 0.0
  %39 = vmatpush1.msra.mxu0 0.0
  %40 = vmatprep.subr.mxu0 0.0
  %41 = vmatpush1.msra.mxu0 0.0
  %42 = vmatprep.subr.mxu0 0.0
  %43 = vmatpush1.msra.mxu0 0.0
  %44 = vmatprep.subr.mxu0 0.0
  %45 = vmatpush1.msra.mxu0 0.0
  %46 = vmatprep.subr.mxu0 0.0
  %47 = vmatpush1.msra.mxu0 0.0
  %48 = vmatprep.subr.mxu0 0.0
  %49 = vmatpush1.msra.mxu0 0.0
  %50 = vmatprep.subr.mxu0 0.0
  %51 = vmatpush1.msra.mxu0 0.0
  %52 = vmatprep.subr.mxu0 0.0
  %53 = vmatpush1.msra.mxu0 0.0
  %54 = vmatprep.subr.mxu0 0.0
  %55 = vmatpush1.msra.mxu0 0.0
  %56 = vmatprep.subr.mxu0 0.0
  %57 = vmatpush1.msra.mxu0 0.0
  %58 = vmatprep.subr.mxu0 0.0
  %59 = vmatpush1.msra.mxu0 0.0
  %60 = vmatprep.subr.mxu0 0.0
  %61 = vmatpush1.msra.mxu0 0.0
  %62 = vmatprep.subr.mxu0 0.0
  %63 = vmatpush1.msra.mxu0 %v30
  %64 = vmatprep.subr.mxu0 0.0
  %65 = vmatpush1.msra.mxu0 %v29
  %66 = vmatprep.subr.mxu0 0.0
  %67 = vmatpush1.msra.mxu0 %v28
  %68 = vmatprep.subr.mxu0 0.0
  %69 = vmatpush1.msra.mxu0 %v27
  %70 = vmatprep.subr.mxu0 0.0
  %71 = vmatpush2.msra.mxu0 0.0
  %72 = vmatprep.subr.mxu0 0.0
  %73 = vmatpush2.msra.mxu0 0.0
  %74 = vmatprep.subr.mxu0 0.0
  %75 = vmatpush2.msra.mxu0 0.0
  %76 = vmatprep.subr.mxu0 0.0
  %77 = vmatpush2.msra.mxu0 0.0
  %78 = vmatprep.subr.mxu0 0.0
  %79 = vmatpush2.msra.mxu0 0.0
  %80 = vmatprep.subr.mxu0 0.0
  %81 = vmatpush2.msra.mxu0 0.0
  %82 = vmatprep.subr.mxu0 0.0
  %83 = vmatpush2.msra.mxu0 0.0
  %84 = vmatprep.subr.mxu0 0.0
  %85 = vmatpush2.msra.mxu0 0.0
  %86 = vmatprep.subr.mxu0 0.0
  %87 = vmatpush2.msra.mxu0 0.0
  %88 = vmatprep.subr.mxu0 0.0
  %89 = vmatpush2.msra.mxu0 0.0
  %90 = vmatprep.subr.mxu0 0.0
  %91 = vmatpush2.msra.mxu0 0.0
  %92 = vmatprep.subr.mxu0 0.0
  %93 = vmatpush2.msra.mxu0 0.0
  %94 = vmatprep.subr.mxu0 0.0
  %95 = vmatpush2.msra.mxu0 0.0
  %96 = vmatprep.subr.mxu0 0.0
  %97 = vmatpush2.msra.mxu0 0.0
  %98 = vmatprep.subr.mxu0 0.0
  %99 = vmatpush2.msra.mxu0 0.0
  %100 = vmatprep.subr.mxu0 0.0
  %101 = vmatpush2.msra.mxu0 0.0
  %102 = vmatprep.mubr.f32.mxu0 0.0
  %103 = vmatmul.mubr.f32.gmra.mxu0 %v33
  %v104 = vpop.f32.mrf.mxu0
  %v105 = vadd.f32 0.0, %v104
  %v106 = vpop.f32.mrf.mxu0
  %107 = vmatprep.mubr.f32.mxu0 0.0
  %108 = vmatmul.mubr.f32.gmra.mxu0 %v36
  %v109 = vpop.f32.mrf.mxu0
  %v110 = vadd.f32 0.0, %v109
  %v111 = vpop.f32.mrf.mxu0
  %112 = vdwg.mxu0
  %s113 = scalar_lea.vmem %s2, 32
  %v114 = vld [vmem:[%s113] sm:$0xff]
  %v115 = vld [vmem:[%s113 + $0x8] sm:$0xff]
  %v116 = vld [vmem:[%s113 + $0x10] sm:$0xff]
  %v117 = vld [vmem:[%s113 + $0x18] sm:$0xff]
  %118 = vmatprep.subr.mxu0 0.0
  %119 = vmatpush1.msra.mxu0 0.0
  %120 = vmatprep.subr.mxu0 0.0
  %121 = vmatpush1.msra.mxu0 0.0
  %122 = vmatprep.subr.mxu0 0.0
  %123 = vmatpush1.msra.mxu0 0.0
  %124 = vmatprep.subr.mxu0 0.0
  %125 = vmatpush1.msra.mxu0 0.0
  %126 = vmatprep.subr.mxu0 0.0
  %127 = vmatpush1.msra.mxu0 0.0
  %128 = vmatprep.subr.mxu0 0.0
  %129 = vmatpush1.msra.mxu0 0.0
  %130 = vmatprep.subr.mxu0 0.0
  %131 = vmatpush1.msra.mxu0 0.0
  %132 = vmatprep.subr.mxu0 0.0
  %133 = vmatpush1.msra.mxu0 0.0
  %134 = vmatprep.subr.mxu0 0.0
  %135 = vmatpush1.msra.mxu0 0.0
  %136 = vmatprep.subr.mxu0 0.0
  %137 = vmatpush1.msra.mxu0 0.0
  %138 = vmatprep.subr.mxu0 0.0
  %139 = vmatpush1.msra.mxu0 0.0
  %140 = vmatprep.subr.mxu0 0.0
  %141 = vmatpush1.msra.mxu0 0.0
  %142 = vmatprep.subr.mxu0 0.0
  %143 = vmatpush1.msra.mxu0 %v117
  %144 = vmatprep.subr.mxu0 0.0
  %145 = vmatpush1.msra.mxu0 %v116
  %146 = vmatprep.subr.mxu0 0.0
  %147 = vmatpush1.msra.mxu0 %v115
  %148 = vmatprep.subr.mxu0 0.0
  %149 = vmatpush1.msra.mxu0 %v114
  %150 = vmatprep.subr.mxu0 0.0
  %151 = vmatpush2.msra.mxu0 0.0
  %152 = vmatprep.subr.mxu0 0.0
  %153 = vmatpush2.msra.mxu0 0.0
  %154 = vmatprep.subr.mxu0 0.0
  %155 = vmatpush2.msra.mxu0 0.0
  %156 = vmatprep.subr.mxu0 0.0
  %157 = vmatpush2.msra.mxu0 0.0
  %158 = vmatprep.subr.mxu0 0.0
  %159 = vmatpush2.msra.mxu0 0.0
  %160 = vmatprep.subr.mxu0 0.0
  %161 = vmatpush2.msra.mxu0 0.0
  %162 = vmatprep.subr.mxu0 0.0
  %163 = vmatpush2.msra.mxu0 0.0
  %164 = vmatprep.subr.mxu0 0.0
  %165 = vmatpush2.msra.mxu0 0.0
  %166 = vmatprep.subr.mxu0 0.0
  %167 = vmatpush2.msra.mxu0 0.0
  %168 = vmatprep.subr.mxu0 0.0
  %169 = vmatpush2.msra.mxu0 0.0
  %170 = vmatprep.subr.mxu0 0.0
  %171 = vmatpush2.msra.mxu0 0.0
  %172 = vmatprep.subr.mxu0 0.0
  %173 = vmatpush2.msra.mxu0 0.0
  %174 = vmatprep.subr.mxu0 0.0
  %175 = vmatpush2.msra.mxu0 0.0
  %176 = vmatprep.subr.mxu0 0.0
  %177 = vmatpush2.msra.mxu0 0.0
  %178 = vmatprep.subr.mxu0 0.0
  %179 = vmatpush2.msra.mxu0 0.0
  %180 = vmatprep.subr.mxu0 0.0
  %181 = vmatpush2.msra.mxu0 0.0
  %182 = vmatprep.mubr.f32.mxu0 0.0
  %183 = vmatmul.mubr.f32.gmra.mxu0 %v33
  %v184 = vpop.f32.mrf.mxu0
  %v185 = vadd.f32 0.0, %v184
  %v186 = vpop.f32.mrf.mxu0
  %187 = vmatprep.mubr.f32.mxu0 0.0
  %188 = vmatmul.mubr.f32.gmra.mxu0 %v36
  %v189 = vpop.f32.mrf.mxu0
  %v190 = vadd.f32 0.0, %v189
  %v191 = vpop.f32.mrf.mxu0
  %192 = vdwg.mxu0
  %vm193 = vcmask 130048
  %v195 = vsel %vm193, %v22, 0
  %v198 = vsel %vm193, %v23, 0
  %200 = vmatprep.subr.mxu0 0.0
  %201 = vmatpush1.msra.mxu0 0.0
  %202 = vmatprep.subr.mxu0 0.0
  %203 = vmatpush1.msra.mxu0 0.0
  %204 = vmatprep.subr.mxu0 0.0
  %205 = vmatpush1.msra.mxu0 0.0
  %206 = vmatprep.subr.mxu0 0.0
  %207 = vmatpush1.msra.mxu0 0.0
  %208 = vmatprep.subr.mxu0 0.0
  %209 = vmatpush1.msra.mxu0 0.0
  %210 = vmatprep.subr.mxu0 0.0
  %211 = vmatpush1.msra.mxu0 0.0
  %212 = vmatprep.subr.mxu0 0.0
  %213 = vmatpush1.msra.mxu0 0.0
  %214 = vmatprep.subr.mxu0 0.0
  %215 = vmatpush1.msra.mxu0 0.0
  %216 = vmatprep.subr.mxu0 0.0
  %217 = vmatpush1.msra.mxu0 0.0
  %218 = vmatprep.subr.mxu0 0.0
  %219 = vmatpush1.msra.mxu0 0.0
  %220 = vmatprep.subr.mxu0 0.0
  %221 = vmatpush1.msra.mxu0 0.0
  %222 = vmatprep.subr.mxu0 0.0
  %223 = vmatpush1.msra.mxu0 0.0
  %224 = vmatprep.subr.mxu0 0.0
  %225 = vmatpush1.msra.mxu0 0.0
  %226 = vmatprep.subr.mxu0 0.0
  %227 = vmatpush1.msra.mxu0 0.0
  %228 = vmatprep.subr.mxu0 0.0
  %229 = vmatpush1.msra.mxu0 %v110
  %230 = vmatprep.subr.mxu0 0.0
  %231 = vmatpush1.msra.mxu0 %v105
  %232 = vmatprep.subr.mxu0 0.0
  %233 = vmatpush2.msra.mxu0 0.0
  %234 = vmatprep.subr.mxu0 0.0
  %235 = vmatpush2.msra.mxu0 0.0
  %236 = vmatprep.subr.mxu0 0.0
  %237 = vmatpush2.msra.mxu0 0.0
  %238 = vmatprep.subr.mxu0 0.0
  %239 = vmatpush2.msra.mxu0 0.0
  %240 = vmatprep.subr.mxu0 0.0
  %241 = vmatpush2.msra.mxu0 0.0
  %242 = vmatprep.subr.mxu0 0.0
  %243 = vmatpush2.msra.mxu0 0.0
  %244 = vmatprep.subr.mxu0 0.0
  %245 = vmatpush2.msra.mxu0 0.0
  %246 = vmatprep.subr.mxu0 0.0
  %247 = vmatpush2.msra.mxu0 0.0
  %248 = vmatprep.subr.mxu0 0.0
  %249 = vmatpush2.msra.mxu0 0.0
  %250 = vmatprep.subr.mxu0 0.0
  %251 = vmatpush2.msra.mxu0 0.0
  %252 = vmatprep.subr.mxu0 0.0
  %253 = vmatpush2.msra.mxu0 0.0
  %254 = vmatprep.subr.mxu0 0.0
  %255 = vmatpush2.msra.mxu0 0.0
  %256 = vmatprep.subr.mxu0 0.0
  %257 = vmatpush2.msra.mxu0 0.0
  %258 = vmatprep.subr.mxu0 0.0
  %259 = vmatpush2.msra.mxu0 0.0
  %260 = vmatprep.subr.mxu0 0.0
  %261 = vmatpush2.msra.mxu0 0.0
  %262 = vmatprep.subr.mxu0 0.0
  %263 = vmatpush2.msra.mxu0 0.0
  %264 = vmatprep.mubr.f32.mxu0 0.0
  %265 = vmatmul.mubr.f32.gmra.mxu0 %v195
  %v266 = vpop.f32.mrf.mxu0
  %v267 = vadd.f32 0.0, %v266
  %v268 = vpop.f32.mrf.mxu0
  %269 = vmatprep.mubr.f32.mxu0 0.0
  %270 = vmatmul.mubr.f32.gmra.mxu0 %v198
  %v271 = vpop.f32.mrf.mxu0
  %v272 = vadd.f32 0.0, %v271
  %v273 = vpop.f32.mrf.mxu0
  %274 = vdwg.mxu0
  %v275 = vmax.f32 %v267, 0.0
  %v276 = vmax.f32 %v272, 0.0
  %v278 = vsel %vm193, %v25, 0
  %v281 = vsel %vm193, %v26, 0
  %283 = vmatprep.subr.mxu0 0.0
  %284 = vmatpush1.msra.mxu0 0.0
  %285 = vmatprep.subr.mxu0 0.0
  %286 = vmatpush1.msra.mxu0 0.0
  %287 = vmatprep.subr.mxu0 0.0
  %288 = vmatpush1.msra.mxu0 0.0
  %289 = vmatprep.subr.mxu0 0.0
  %290 = vmatpush1.msra.mxu0 0.0
  %291 = vmatprep.subr.mxu0 0.0
  %292 = vmatpush1.msra.mxu0 0.0
  %293 = vmatprep.subr.mxu0 0.0
  %294 = vmatpush1.msra.mxu0 0.0
  %295 = vmatprep.subr.mxu0 0.0
  %296 = vmatpush1.msra.mxu0 0.0
  %297 = vmatprep.subr.mxu0 0.0
  %298 = vmatpush1.msra.mxu0 0.0
  %299 = vmatprep.subr.mxu0 0.0
  %300 = vmatpush1.msra.mxu0 0.0
  %301 = vmatprep.subr.mxu0 0.0
  %302 = vmatpush1.msra.mxu0 0.0
  %303 = vmatprep.subr.mxu0 0.0
  %304 = vmatpush1.msra.mxu0 0.0
  %305 = vmatprep.subr.mxu0 0.0
  %306 = vmatpush1.msra.mxu0 0.0
  %307 = vmatprep.subr.mxu0 0.0
  %308 = vmatpush1.msra.mxu0 0.0
  %309 = vmatprep.subr.mxu0 0.0
  %310 = vmatpush1.msra.mxu0 0.0
  %311 = vmatprep.subr.mxu0 0.0
  %312 = vmatpush1.msra.mxu0 %v190
  %313 = vmatprep.subr.mxu0 0.0
  %314 = vmatpush1.msra.mxu0 %v185
  %315 = vmatprep.subr.mxu0 0.0
  %316 = vmatpush2.msra.mxu0 0.0
  %317 = vmatprep.subr.mxu0 0.0
  %318 = vmatpush2.msra.mxu0 0.0
  %319 = vmatprep.subr.mxu0 0.0
  %320 = vmatpush2.msra.mxu0 0.0
  %321 = vmatprep.subr.mxu0 0.0
  %322 = vmatpush2.msra.mxu0 0.0
  %323 = vmatprep.subr.mxu0 0.0
  %324 = vmatpush2.msra.mxu0 0.0
  %325 = vmatprep.subr.mxu0 0.0
  %326 = vmatpush2.msra.mxu0 0.0
  %327 = vmatprep.subr.mxu0 0.0
  %328 = vmatpush2.msra.mxu0 0.0
  %329 = vmatprep.subr.mxu0 0.0
  %330 = vmatpush2.msra.mxu0 0.0
  %331 = vmatprep.subr.mxu0 0.0
  %332 = vmatpush2.msra.mxu0 0.0
  %333 = vmatprep.subr.mxu0 0.0
  %334 = vmatpush2.msra.mxu0 0.0
  %335 = vmatprep.subr.mxu0 0.0
  %336 = vmatpush2.msra.mxu0 0.0
  %337 = vmatprep.subr.mxu0 0.0
  %338 = vmatpush2.msra.mxu0 0.0
  %339 = vmatprep.subr.mxu0 0.0
  %340 = vmatpush2.msra.mxu0 0.0
  %341 = vmatprep.subr.mxu0 0.0
  %342 = vmatpush2.msra.mxu0 0.0
  %343 = vmatprep.subr.mxu0 0.0
  %344 = vmatpush2.msra.mxu0 0.0
  %345 = vmatprep.subr.mxu0 0.0
  %346 = vmatpush2.msra.mxu0 0.0
  %347 = vmatprep.mubr.f32.mxu0 0.0
  %348 = vmatmul.mubr.f32.gmra.mxu0 %v278
  %v349 = vpop.f32.mrf.mxu0
  %v350 = vadd.f32 0.0, %v349
  %v351 = vpop.f32.mrf.mxu0
  %352 = vmatprep.mubr.f32.mxu0 0.0
  %353 = vmatmul.mubr.f32.gmra.mxu0 %v281
  %v354 = vpop.f32.mrf.mxu0
  %v355 = vadd.f32 0.0, %v354
  %v356 = vpop.f32.mrf.mxu0
  %357 = vdwg.mxu0
  %v358 = vmax.f32 %v350, 0.0
  %v359 = vmax.f32 %v355, 0.0
  %v360 = vadd.f32 %v275, %v358
  %v361 = vadd.f32 %v276, %v359
  %v362 = vmul.f32 %v360, 0.5
  %v363 = vmul.f32 %v361, 0.5
  %s364 = scalar_lea.vmem %s2, 64
  %v365 = vld [vmem:[%s364] sm:$0xff]
  %v366 = vld [vmem:[%s364 + $0x8] sm:$0xff]
  %v367 = vld [vmem:[%s364 + $0x10] sm:$0xff]
  %v368 = vld [vmem:[%s364 + $0x18] sm:$0xff]
  %v370 = vsel %vm31, %v362, 0
  %v373 = vsel %vm31, %v363, 0
  %375 = vmatprep.subr.mxu0 0.0
  %376 = vmatpush1.msra.mxu0 0.0
  %377 = vmatprep.subr.mxu0 0.0
  %378 = vmatpush1.msra.mxu0 0.0
  %379 = vmatprep.subr.mxu0 0.0
  %380 = vmatpush1.msra.mxu0 0.0
  %381 = vmatprep.subr.mxu0 0.0
  %382 = vmatpush1.msra.mxu0 0.0
  %383 = vmatprep.subr.mxu0 0.0
  %384 = vmatpush1.msra.mxu0 0.0
  %385 = vmatprep.subr.mxu0 0.0
  %386 = vmatpush1.msra.mxu0 0.0
  %387 = vmatprep.subr.mxu0 0.0
  %388 = vmatpush1.msra.mxu0 0.0
  %389 = vmatprep.subr.mxu0 0.0
  %390 = vmatpush1.msra.mxu0 0.0
  %391 = vmatprep.subr.mxu0 0.0
  %392 = vmatpush1.msra.mxu0 0.0
  %393 = vmatprep.subr.mxu0 0.0
  %394 = vmatpush1.msra.mxu0 0.0
  %395 = vmatprep.subr.mxu0 0.0
  %396 = vmatpush1.msra.mxu0 0.0
  %397 = vmatprep.subr.mxu0 0.0
  %398 = vmatpush1.msra.mxu0 0.0
  %399 = vmatprep.subr.mxu0 0.0
  %400 = vmatpush1.msra.mxu0 %v368
  %401 = vmatprep.subr.mxu0 0.0
  %402 = vmatpush1.msra.mxu0 %v367
  %403 = vmatprep.subr.mxu0 0.0
  %404 = vmatpush1.msra.mxu0 %v366
  %405 = vmatprep.subr.mxu0 0.0
  %406 = vmatpush1.msra.mxu0 %v365
  %407 = vmatprep.subr.mxu0 0.0
  %408 = vmatpush2.msra.mxu0 0.0
  %409 = vmatprep.subr.mxu0 0.0
  %410 = vmatpush2.msra.mxu0 0.0
  %411 = vmatprep.subr.mxu0 0.0
  %412 = vmatpush2.msra.mxu0 0.0
  %413 = vmatprep.subr.mxu0 0.0
  %414 = vmatpush2.msra.mxu0 0.0
  %415 = vmatprep.subr.mxu0 0.0
  %416 = vmatpush2.msra.mxu0 0.0
  %417 = vmatprep.subr.mxu0 0.0
  %418 = vmatpush2.msra.mxu0 0.0
  %419 = vmatprep.subr.mxu0 0.0
  %420 = vmatpush2.msra.mxu0 0.0
  %421 = vmatprep.subr.mxu0 0.0
  %422 = vmatpush2.msra.mxu0 0.0
  %423 = vmatprep.subr.mxu0 0.0
  %424 = vmatpush2.msra.mxu0 0.0
  %425 = vmatprep.subr.mxu0 0.0
  %426 = vmatpush2.msra.mxu0 0.0
  %427 = vmatprep.subr.mxu0 0.0
  %428 = vmatpush2.msra.mxu0 0.0
  %429 = vmatprep.subr.mxu0 0.0
  %430 = vmatpush2.msra.mxu0 0.0
  %431 = vmatprep.subr.mxu0 0.0
  %432 = vmatpush2.msra.mxu0 0.0
  %433 = vmatprep.subr.mxu0 0.0
  %434 = vmatpush2.msra.mxu0 0.0
  %435 = vmatprep.subr.mxu0 0.0
  %436 = vmatpush2.msra.mxu0 0.0
  %437 = vmatprep.subr.mxu0 0.0
  %438 = vmatpush2.msra.mxu0 0.0
  %439 = vmatprep.mubr.f32.mxu0 0.0
  %440 = vmatmul.mubr.f32.gmra.mxu0 %v370
  %v441 = vpop.f32.mrf.mxu0
  %v442 = vadd.f32 0.0, %v441
  %v443 = vpop.f32.mrf.mxu0
  %444 = vmatprep.mubr.f32.mxu0 0.0
  %445 = vmatmul.mubr.f32.gmra.mxu0 %v373
  %v446 = vpop.f32.mrf.mxu0
  %v447 = vadd.f32 0.0, %v446
  %v448 = vpop.f32.mrf.mxu0
  %449 = vdwg.mxu0
  %s450 = scalar_lea.vmem %s2, 96
  %v451 = vld [vmem:[%s450] sm:$0xff]
  %v452 = vld [vmem:[%s450 + $0x8] sm:$0xff]
  %v453 = vld [vmem:[%s450 + $0x10] sm:$0xff]
  %v454 = vld [vmem:[%s450 + $0x18] sm:$0xff]
  %455 = vmatprep.subr.mxu0 0.0
  %456 = vmatpush1.msra.mxu0 0.0
  %457 = vmatprep.subr.mxu0 0.0
  %458 = vmatpush1.msra.mxu0 0.0
  %459 = vmatprep.subr.mxu0 0.0
  %460 = vmatpush1.msra.mxu0 0.0
  %461 = vmatprep.subr.mxu0 0.0
  %462 = vmatpush1.msra.mxu0 0.0
  %463 = vmatprep.subr.mxu0 0.0
  %464 = vmatpush1.msra.mxu0 0.0
  %465 = vmatprep.subr.mxu0 0.0
  %466 = vmatpush1.msra.mxu0 0.0
  %467 = vmatprep.subr.mxu0 0.0
  %468 = vmatpush1.msra.mxu0 0.0
  %469 = vmatprep.subr.mxu0 0.0
  %470 = vmatpush1.msra.mxu0 0.0
  %471 = vmatprep.subr.mxu0 0.0
  %472 = vmatpush1.msra.mxu0 0.0
  %473 = vmatprep.subr.mxu0 0.0
  %474 = vmatpush1.msra.mxu0 0.0
  %475 = vmatprep.subr.mxu0 0.0
  %476 = vmatpush1.msra.mxu0 0.0
  %477 = vmatprep.subr.mxu0 0.0
  %478 = vmatpush1.msra.mxu0 0.0
  %479 = vmatprep.subr.mxu0 0.0
  %480 = vmatpush1.msra.mxu0 %v454
  %481 = vmatprep.subr.mxu0 0.0
  %482 = vmatpush1.msra.mxu0 %v453
  %483 = vmatprep.subr.mxu0 0.0
  %484 = vmatpush1.msra.mxu0 %v452
  %485 = vmatprep.subr.mxu0 0.0
  %486 = vmatpush1.msra.mxu0 %v451
  %487 = vmatprep.subr.mxu0 0.0
  %488 = vmatpush2.msra.mxu0 0.0
  %489 = vmatprep.subr.mxu0 0.0
  %490 = vmatpush2.msra.mxu0 0.0
  %491 = vmatprep.subr.mxu0 0.0
  %492 = vmatpush2.msra.mxu0 0.0
  %493 = vmatprep.subr.mxu0 0.0
  %494 = vmatpush2.msra.mxu0 0.0
  %495 = vmatprep.subr.mxu0 0.0
  %496 = vmatpush2.msra.mxu0 0.0
  %497 = vmatprep.subr.mxu0 0.0
  %498 = vmatpush2.msra.mxu0 0.0
  %499 = vmatprep.subr.mxu0 0.0
  %500 = vmatpush2.msra.mxu0 0.0
  %501 = vmatprep.subr.mxu0 0.0
  %502 = vmatpush2.msra.mxu0 0.0
  %503 = vmatprep.subr.mxu0 0.0
  %504 = vmatpush2.msra.mxu0 0.0
  %505 = vmatprep.subr.mxu0 0.0
  %506 = vmatpush2.msra.mxu0 0.0
  %507 = vmatprep.subr.mxu0 0.0
  %508 = vmatpush2.msra.mxu0 0.0
  %509 = vmatprep.subr.mxu0 0.0
  %510 = vmatpush2.msra.mxu0 0.0
  %511 = vmatprep.subr.mxu0 0.0
  %512 = vmatpush2.msra.mxu0 0.0
  %513 = vmatprep.subr.mxu0 0.0
  %514 = vmatpush2.msra.mxu0 0.0
  %515 = vmatprep.subr.mxu0 0.0
  %516 = vmatpush2.msra.mxu0 0.0
  %517 = vmatprep.subr.mxu0 0.0
  %518 = vmatpush2.msra.mxu0 0.0
  %519 = vmatprep.mubr.f32.mxu0 0.0
  %520 = vmatmul.mubr.f32.gmra.mxu0 %v370
  %v521 = vpop.f32.mrf.mxu0
  %v522 = vadd.f32 0.0, %v521
  %v523 = vpop.f32.mrf.mxu0
  %524 = vmatprep.mubr.f32.mxu0 0.0
  %525 = vmatmul.mubr.f32.gmra.mxu0 %v373
  %v526 = vpop.f32.mrf.mxu0
  %v527 = vadd.f32 0.0, %v526
  %v528 = vpop.f32.mrf.mxu0
  %529 = vdwg.mxu0
  %530 = vmatprep.subr.mxu0 0.0
  %531 = vmatpush1.msra.mxu0 0.0
  %532 = vmatprep.subr.mxu0 0.0
  %533 = vmatpush1.msra.mxu0 0.0
  %534 = vmatprep.subr.mxu0 0.0
  %535 = vmatpush1.msra.mxu0 0.0
  %536 = vmatprep.subr.mxu0 0.0
  %537 = vmatpush1.msra.mxu0 0.0
  %538 = vmatprep.subr.mxu0 0.0
  %539 = vmatpush1.msra.mxu0 0.0
  %540 = vmatprep.subr.mxu0 0.0
  %541 = vmatpush1.msra.mxu0 0.0
  %542 = vmatprep.subr.mxu0 0.0
  %543 = vmatpush1.msra.mxu0 0.0
  %544 = vmatprep.subr.mxu0 0.0
  %545 = vmatpush1.msra.mxu0 0.0
  %546 = vmatprep.subr.mxu0 0.0
  %547 = vmatpush1.msra.mxu0 0.0
  %548 = vmatprep.subr.mxu0 0.0
  %549 = vmatpush1.msra.mxu0 0.0
  %550 = vmatprep.subr.mxu0 0.0
  %551 = vmatpush1.msra.mxu0 0.0
  %552 = vmatprep.subr.mxu0 0.0
  %553 = vmatpush1.msra.mxu0 0.0
  %554 = vmatprep.subr.mxu0 0.0
  %555 = vmatpush1.msra.mxu0 0.0
  %556 = vmatprep.subr.mxu0 0.0
  %557 = vmatpush1.msra.mxu0 0.0
  %558 = vmatprep.subr.mxu0 0.0
  %559 = vmatpush1.msra.mxu0 %v447
  %560 = vmatprep.subr.mxu0 0.0
  %561 = vmatpush1.msra.mxu0 %v442
  %562 = vmatprep.subr.mxu0 0.0
  %563 = vmatpush2.msra.mxu0 0.0
  %564 = vmatprep.subr.mxu0 0.0
  %565 = vmatpush2.msra.mxu0 0.0
  %566 = vmatprep.subr.mxu0 0.0
  %567 = vmatpush2.msra.mxu0 0.0
  %568 = vmatprep.subr.mxu0 0.0
  %569 = vmatpush2.msra.mxu0 0.0
  %570 = vmatprep.subr.mxu0 0.0
  %571 = vmatpush2.msra.mxu0 0.0
  %572 = vmatprep.subr.mxu0 0.0
  %573 = vmatpush2.msra.mxu0 0.0
  %574 = vmatprep.subr.mxu0 0.0
  %575 = vmatpush2.msra.mxu0 0.0
  %576 = vmatprep.subr.mxu0 0.0
  %577 = vmatpush2.msra.mxu0 0.0
  %578 = vmatprep.subr.mxu0 0.0
  %579 = vmatpush2.msra.mxu0 0.0
  %580 = vmatprep.subr.mxu0 0.0
  %581 = vmatpush2.msra.mxu0 0.0
  %582 = vmatprep.subr.mxu0 0.0
  %583 = vmatpush2.msra.mxu0 0.0
  %584 = vmatprep.subr.mxu0 0.0
  %585 = vmatpush2.msra.mxu0 0.0
  %586 = vmatprep.subr.mxu0 0.0
  %587 = vmatpush2.msra.mxu0 0.0
  %588 = vmatprep.subr.mxu0 0.0
  %589 = vmatpush2.msra.mxu0 0.0
  %590 = vmatprep.subr.mxu0 0.0
  %591 = vmatpush2.msra.mxu0 0.0
  %592 = vmatprep.subr.mxu0 0.0
  %593 = vmatpush2.msra.mxu0 0.0
  %594 = vmatprep.mubr.f32.mxu0 0.0
  %595 = vmatmul.mubr.f32.gmra.mxu0 %v195
  %v596 = vpop.f32.mrf.mxu0
  %v597 = vadd.f32 0.0, %v596
  %v598 = vpop.f32.mrf.mxu0
  %599 = vmatprep.mubr.f32.mxu0 0.0
  %600 = vmatmul.mubr.f32.gmra.mxu0 %v198
  %v601 = vpop.f32.mrf.mxu0
  %v602 = vadd.f32 0.0, %v601
  %v603 = vpop.f32.mrf.mxu0
  %604 = vdwg.mxu0
  %v605 = vmax.f32 %v597, 0.0
  %v606 = vmax.f32 %v602, 0.0
  %607 = vmatprep.subr.mxu0 0.0
  %608 = vmatpush1.msra.mxu0 0.0
  %609 = vmatprep.subr.mxu0 0.0
  %610 = vmatpush1.msra.mxu0 0.0
  %611 = vmatprep.subr.mxu0 0.0
  %612 = vmatpush1.msra.mxu0 0.0
  %613 = vmatprep.subr.mxu0 0.0
  %614 = vmatpush1.msra.mxu0 0.0
  %615 = vmatprep.subr.mxu0 0.0
  %616 = vmatpush1.msra.mxu0 0.0
  %617 = vmatprep.subr.mxu0 0.0
  %618 = vmatpush1.msra.mxu0 0.0
  %619 = vmatprep.subr.mxu0 0.0
  %620 = vmatpush1.msra.mxu0 0.0
  %621 = vmatprep.subr.mxu0 0.0
  %622 = vmatpush1.msra.mxu0 0.0
  %623 = vmatprep.subr.mxu0 0.0
  %624 = vmatpush1.msra.mxu0 0.0
  %625 = vmatprep.subr.mxu0 0.0
  %626 = vmatpush1.msra.mxu0 0.0
  %627 = vmatprep.subr.mxu0 0.0
  %628 = vmatpush1.msra.mxu0 0.0
  %629 = vmatprep.subr.mxu0 0.0
  %630 = vmatpush1.msra.mxu0 0.0
  %631 = vmatprep.subr.mxu0 0.0
  %632 = vmatpush1.msra.mxu0 0.0
  %633 = vmatprep.subr.mxu0 0.0
  %634 = vmatpush1.msra.mxu0 0.0
  %635 = vmatprep.subr.mxu0 0.0
  %636 = vmatpush1.msra.mxu0 %v527
  %637 = vmatprep.subr.mxu0 0.0
  %638 = vmatpush1.msra.mxu0 %v522
  %639 = vmatprep.subr.mxu0 0.0
  %640 = vmatpush2.msra.mxu0 0.0
  %641 = vmatprep.subr.mxu0 0.0
  %642 = vmatpush2.msra.mxu0 0.0
  %643 = vmatprep.subr.mxu0 0.0
  %644 = vmatpush2.msra.mxu0 0.0
  %645 = vmatprep.subr.mxu0 0.0
  %646 = vmatpush2.msra.mxu0 0.0
  %647 = vmatprep.subr.mxu0 0.0
  %648 = vmatpush2.msra.mxu0 0.0
  %649 = vmatprep.subr.mxu0 0.0
  %650 = vmatpush2.msra.mxu0 0.0
  %651 = vmatprep.subr.mxu0 0.0
  %652 = vmatpush2.msra.mxu0 0.0
  %653 = vmatprep.subr.mxu0 0.0
  %654 = vmatpush2.msra.mxu0 0.0
  %655 = vmatprep.subr.mxu0 0.0
  %656 = vmatpush2.msra.mxu0 0.0
  %657 = vmatprep.subr.mxu0 0.0
  %658 = vmatpush2.msra.mxu0 0.0
  %659 = vmatprep.subr.mxu0 0.0
  %660 = vmatpush2.msra.mxu0 0.0
  %661 = vmatprep.subr.mxu0 0.0
  %662 = vmatpush2.msra.mxu0 0.0
  %663 = vmatprep.subr.mxu0 0.0
  %664 = vmatpush2.msra.mxu0 0.0
  %665 = vmatprep.subr.mxu0 0.0
  %666 = vmatpush2.msra.mxu0 0.0
  %667 = vmatprep.subr.mxu0 0.0
  %668 = vmatpush2.msra.mxu0 0.0
  %669 = vmatprep.subr.mxu0 0.0
  %670 = vmatpush2.msra.mxu0 0.0
  %671 = vmatprep.mubr.f32.mxu0 0.0
  %672 = vmatmul.mubr.f32.gmra.mxu0 %v278
  %v673 = vpop.f32.mrf.mxu0
  %v674 = vadd.f32 0.0, %v673
  %v675 = vpop.f32.mrf.mxu0
  %676 = vmatprep.mubr.f32.mxu0 0.0
  %677 = vmatmul.mubr.f32.gmra.mxu0 %v281
  %v678 = vpop.f32.mrf.mxu0
  %v679 = vadd.f32 0.0, %v678
  %v680 = vpop.f32.mrf.mxu0
  %681 = vdwg.mxu0
  %v682 = vmax.f32 %v674, 0.0
  %v683 = vmax.f32 %v679, 0.0
  %v684 = vadd.f32 %v605, %v682
  %v685 = vadd.f32 %v606, %v683
  %v686 = vmul.f32 %v684, 0.5
  %v687 = vmul.f32 %v685, 0.5
  %s688 = scalar_lea.vmem %s2, 128
  %v689 = vld [vmem:[%s688] sm:$0xff]
  %v690 = vld [vmem:[%s688 + $0x8] sm:$0xff]
  %v691 = vld [vmem:[%s688 + $0x10] sm:$0xff]
  %v692 = vld [vmem:[%s688 + $0x18] sm:$0xff]
  %v694 = vsel %vm31, %v686, 0
  %v697 = vsel %vm31, %v687, 0
  %699 = vmatprep.subr.mxu0 0.0
  %700 = vmatpush1.msra.mxu0 0.0
  %701 = vmatprep.subr.mxu0 0.0
  %702 = vmatpush1.msra.mxu0 0.0
  %703 = vmatprep.subr.mxu0 0.0
  %704 = vmatpush1.msra.mxu0 0.0
  %705 = vmatprep.subr.mxu0 0.0
  %706 = vmatpush1.msra.mxu0 0.0
  %707 = vmatprep.subr.mxu0 0.0
  %708 = vmatpush1.msra.mxu0 0.0
  %709 = vmatprep.subr.mxu0 0.0
  %710 = vmatpush1.msra.mxu0 0.0
  %711 = vmatprep.subr.mxu0 0.0
  %712 = vmatpush1.msra.mxu0 0.0
  %713 = vmatprep.subr.mxu0 0.0
  %714 = vmatpush1.msra.mxu0 0.0
  %715 = vmatprep.subr.mxu0 0.0
  %716 = vmatpush1.msra.mxu0 0.0
  %717 = vmatprep.subr.mxu0 0.0
  %718 = vmatpush1.msra.mxu0 0.0
  %719 = vmatprep.subr.mxu0 0.0
  %720 = vmatpush1.msra.mxu0 0.0
  %721 = vmatprep.subr.mxu0 0.0
  %722 = vmatpush1.msra.mxu0 0.0
  %723 = vmatprep.subr.mxu0 0.0
  %724 = vmatpush1.msra.mxu0 %v692
  %725 = vmatprep.subr.mxu0 0.0
  %726 = vmatpush1.msra.mxu0 %v691
  %727 = vmatprep.subr.mxu0 0.0
  %728 = vmatpush1.msra.mxu0 %v690
  %729 = vmatprep.subr.mxu0 0.0
  %730 = vmatpush1.msra.mxu0 %v689
  %731 = vmatprep.subr.mxu0 0.0
  %732 = vmatpush2.msra.mxu0 0.0
  %733 = vmatprep.subr.mxu0 0.0
  %734 = vmatpush2.msra.mxu0 0.0
  %735 = vmatprep.subr.mxu0 0.0
  %736 = vmatpush2.msra.mxu0 0.0
  %737 = vmatprep.subr.mxu0 0.0
  %738 = vmatpush2.msra.mxu0 0.0
  %739 = vmatprep.subr.mxu0 0.0
  %740 = vmatpush2.msra.mxu0 0.0
  %741 = vmatprep.subr.mxu0 0.0
  %742 = vmatpush2.msra.mxu0 0.0
  %743 = vmatprep.subr.mxu0 0.0
  %744 = vmatpush2.msra.mxu0 0.0
  %745 = vmatprep.subr.mxu0 0.0
  %746 = vmatpush2.msra.mxu0 0.0
  %747 = vmatprep.subr.mxu0 0.0
  %748 = vmatpush2.msra.mxu0 0.0
  %749 = vmatprep.subr.mxu0 0.0
  %750 = vmatpush2.msra.mxu0 0.0
  %751 = vmatprep.subr.mxu0 0.0
  %752 = vmatpush2.msra.mxu0 0.0
  %753 = vmatprep.subr.mxu0 0.0
  %754 = vmatpush2.msra.mxu0 0.0
  %755 = vmatprep.subr.mxu0 0.0
  %756 = vmatpush2.msra.mxu0 0.0
  %757 = vmatprep.subr.mxu0 0.0
  %758 = vmatpush2.msra.mxu0 0.0
  %759 = vmatprep.subr.mxu0 0.0
  %760 = vmatpush2.msra.mxu0 0.0
  %761 = vmatprep.subr.mxu0 0.0
  %762 = vmatpush2.msra.mxu0 0.0
  %763 = vmatprep.mubr.f32.mxu0 0.0
  %764 = vmatmul.mubr.f32.gmra.mxu0 %v694
  %v765 = vpop.f32.mrf.mxu0
  %v766 = vadd.f32 0.0, %v765
  %v767 = vpop.f32.mrf.mxu0
  %768 = vmatprep.mubr.f32.mxu0 0.0
  %769 = vmatmul.mubr.f32.gmra.mxu0 %v697
  %v770 = vpop.f32.mrf.mxu0
  %v771 = vadd.f32 0.0, %v770
  %v772 = vpop.f32.mrf.mxu0
  %773 = vdwg.mxu0
  %s774 = scalar_lea.vmem %s2, 160
  %v775 = vld [vmem:[%s774] sm:$0xff]
  %v776 = vld [vmem:[%s774 + $0x8] sm:$0xff]
  %v777 = vld [vmem:[%s774 + $0x10] sm:$0xff]
  %v778 = vld [vmem:[%s774 + $0x18] sm:$0xff]
  %779 = vmatprep.subr.mxu0 0.0
  %780 = vmatpush1.msra.mxu0 0.0
  %781 = vmatprep.subr.mxu0 0.0
  %782 = vmatpush1.msra.mxu0 0.0
  %783 = vmatprep.subr.mxu0 0.0
  %784 = vmatpush1.msra.mxu0 0.0
  %785 = vmatprep.subr.mxu0 0.0
  %786 = vmatpush1.msra.mxu0 0.0
  %787 = vmatprep.subr.mxu0 0.0
  %788 = vmatpush1.msra.mxu0 0.0
  %789 = vmatprep.subr.mxu0 0.0
  %790 = vmatpush1.msra.mxu0 0.0
  %791 = vmatprep.subr.mxu0 0.0
  %792 = vmatpush1.msra.mxu0 0.0
  %793 = vmatprep.subr.mxu0 0.0
  %794 = vmatpush1.msra.mxu0 0.0
  %795 = vmatprep.subr.mxu0 0.0
  %796 = vmatpush1.msra.mxu0 0.0
  %797 = vmatprep.subr.mxu0 0.0
  %798 = vmatpush1.msra.mxu0 0.0
  %799 = vmatprep.subr.mxu0 0.0
  %800 = vmatpush1.msra.mxu0 0.0
  %801 = vmatprep.subr.mxu0 0.0
  %802 = vmatpush1.msra.mxu0 0.0
  %803 = vmatprep.subr.mxu0 0.0
  %804 = vmatpush1.msra.mxu0 %v778
  %805 = vmatprep.subr.mxu0 0.0
  %806 = vmatpush1.msra.mxu0 %v777
  %807 = vmatprep.subr.mxu0 0.0
  %808 = vmatpush1.msra.mxu0 %v776
  %809 = vmatprep.subr.mxu0 0.0
  %810 = vmatpush1.msra.mxu0 %v775
  %811 = vmatprep.subr.mxu0 0.0
  %812 = vmatpush2.msra.mxu0 0.0
  %813 = vmatprep.subr.mxu0 0.0
  %814 = vmatpush2.msra.mxu0 0.0
  %815 = vmatprep.subr.mxu0 0.0
  %816 = vmatpush2.msra.mxu0 0.0
  %817 = vmatprep.subr.mxu0 0.0
  %818 = vmatpush2.msra.mxu0 0.0
  %819 = vmatprep.subr.mxu0 0.0
  %820 = vmatpush2.msra.mxu0 0.0
  %821 = vmatprep.subr.mxu0 0.0
  %822 = vmatpush2.msra.mxu0 0.0
  %823 = vmatprep.subr.mxu0 0.0
  %824 = vmatpush2.msra.mxu0 0.0
  %825 = vmatprep.subr.mxu0 0.0
  %826 = vmatpush2.msra.mxu0 0.0
  %827 = vmatprep.subr.mxu0 0.0
  %828 = vmatpush2.msra.mxu0 0.0
  %829 = vmatprep.subr.mxu0 0.0
  %830 = vmatpush2.msra.mxu0 0.0
  %831 = vmatprep.subr.mxu0 0.0
  %832 = vmatpush2.msra.mxu0 0.0
  %833 = vmatprep.subr.mxu0 0.0
  %834 = vmatpush2.msra.mxu0 0.0
  %835 = vmatprep.subr.mxu0 0.0
  %836 = vmatpush2.msra.mxu0 0.0
  %837 = vmatprep.subr.mxu0 0.0
  %838 = vmatpush2.msra.mxu0 0.0
  %839 = vmatprep.subr.mxu0 0.0
  %840 = vmatpush2.msra.mxu0 0.0
  %841 = vmatprep.subr.mxu0 0.0
  %842 = vmatpush2.msra.mxu0 0.0
  %843 = vmatprep.mubr.f32.mxu0 0.0
  %844 = vmatmul.mubr.f32.gmra.mxu0 %v694
  %v845 = vpop.f32.mrf.mxu0
  %v846 = vadd.f32 0.0, %v845
  %v847 = vpop.f32.mrf.mxu0
  %848 = vmatprep.mubr.f32.mxu0 0.0
  %849 = vmatmul.mubr.f32.gmra.mxu0 %v697
  %v850 = vpop.f32.mrf.mxu0
  %v851 = vadd.f32 0.0, %v850
  %v852 = vpop.f32.mrf.mxu0
  %853 = vdwg.mxu0
  %854 = vmatprep.subr.mxu0 0.0
  %855 = vmatpush1.msra.mxu0 0.0
  %856 = vmatprep.subr.mxu0 0.0
  %857 = vmatpush1.msra.mxu0 0.0
  %858 = vmatprep.subr.mxu0 0.0
  %859 = vmatpush1.msra.mxu0 0.0
  %860 = vmatprep.subr.mxu0 0.0
  %861 = vmatpush1.msra.mxu0 0.0
  %862 = vmatprep.subr.mxu0 0.0
  %863 = vmatpush1.msra.mxu0 0.0
  %864 = vmatprep.subr.mxu0 0.0
  %865 = vmatpush1.msra.mxu0 0.0
  %866 = vmatprep.subr.mxu0 0.0
  %867 = vmatpush1.msra.mxu0 0.0
  %868 = vmatprep.subr.mxu0 0.0
  %869 = vmatpush1.msra.mxu0 0.0
  %870 = vmatprep.subr.mxu0 0.0
  %871 = vmatpush1.msra.mxu0 0.0
  %872 = vmatprep.subr.mxu0 0.0
  %873 = vmatpush1.msra.mxu0 0.0
  %874 = vmatprep.subr.mxu0 0.0
  %875 = vmatpush1.msra.mxu0 0.0
  %876 = vmatprep.subr.mxu0 0.0
  %877 = vmatpush1.msra.mxu0 0.0
  %878 = vmatprep.subr.mxu0 0.0
  %879 = vmatpush1.msra.mxu0 0.0
  %880 = vmatprep.subr.mxu0 0.0
  %881 = vmatpush1.msra.mxu0 0.0
  %882 = vmatprep.subr.mxu0 0.0
  %883 = vmatpush1.msra.mxu0 %v771
  %884 = vmatprep.subr.mxu0 0.0
  %885 = vmatpush1.msra.mxu0 %v766
  %886 = vmatprep.subr.mxu0 0.0
  %887 = vmatpush2.msra.mxu0 0.0
  %888 = vmatprep.subr.mxu0 0.0
  %889 = vmatpush2.msra.mxu0 0.0
  %890 = vmatprep.subr.mxu0 0.0
  %891 = vmatpush2.msra.mxu0 0.0
  %892 = vmatprep.subr.mxu0 0.0
  %893 = vmatpush2.msra.mxu0 0.0
  %894 = vmatprep.subr.mxu0 0.0
  %895 = vmatpush2.msra.mxu0 0.0
  %896 = vmatprep.subr.mxu0 0.0
  %897 = vmatpush2.msra.mxu0 0.0
  %898 = vmatprep.subr.mxu0 0.0
  %899 = vmatpush2.msra.mxu0 0.0
  %900 = vmatprep.subr.mxu0 0.0
  %901 = vmatpush2.msra.mxu0 0.0
  %902 = vmatprep.subr.mxu0 0.0
  %903 = vmatpush2.msra.mxu0 0.0
  %904 = vmatprep.subr.mxu0 0.0
  %905 = vmatpush2.msra.mxu0 0.0
  %906 = vmatprep.subr.mxu0 0.0
  %907 = vmatpush2.msra.mxu0 0.0
  %908 = vmatprep.subr.mxu0 0.0
  %909 = vmatpush2.msra.mxu0 0.0
  %910 = vmatprep.subr.mxu0 0.0
  %911 = vmatpush2.msra.mxu0 0.0
  %912 = vmatprep.subr.mxu0 0.0
  %913 = vmatpush2.msra.mxu0 0.0
  %914 = vmatprep.subr.mxu0 0.0
  %915 = vmatpush2.msra.mxu0 0.0
  %916 = vmatprep.subr.mxu0 0.0
  %917 = vmatpush2.msra.mxu0 0.0
  %918 = vmatprep.mubr.f32.mxu0 0.0
  %919 = vmatmul.mubr.f32.gmra.mxu0 %v195
  %v920 = vpop.f32.mrf.mxu0
  %v921 = vadd.f32 0.0, %v920
  %v922 = vpop.f32.mrf.mxu0
  %923 = vmatprep.mubr.f32.mxu0 0.0
  %924 = vmatmul.mubr.f32.gmra.mxu0 %v198
  %v925 = vpop.f32.mrf.mxu0
  %v926 = vadd.f32 0.0, %v925
  %v927 = vpop.f32.mrf.mxu0
  %928 = vdwg.mxu0
  %v929 = vmax.f32 %v921, 0.0
  %v930 = vmax.f32 %v926, 0.0
  %931 = vmatprep.subr.mxu0 0.0
  %932 = vmatpush1.msra.mxu0 0.0
  %933 = vmatprep.subr.mxu0 0.0
  %934 = vmatpush1.msra.mxu0 0.0
  %935 = vmatprep.subr.mxu0 0.0
  %936 = vmatpush1.msra.mxu0 0.0
  %937 = vmatprep.subr.mxu0 0.0
  %938 = vmatpush1.msra.mxu0 0.0
  %939 = vmatprep.subr.mxu0 0.0
  %940 = vmatpush1.msra.mxu0 0.0
  %941 = vmatprep.subr.mxu0 0.0
  %942 = vmatpush1.msra.mxu0 0.0
  %943 = vmatprep.subr.mxu0 0.0
  %944 = vmatpush1.msra.mxu0 0.0
  %945 = vmatprep.subr.mxu0 0.0
  %946 = vmatpush1.msra.mxu0 0.0
  %947 = vmatprep.subr.mxu0 0.0
  %948 = vmatpush1.msra.mxu0 0.0
  %949 = vmatprep.subr.mxu0 0.0
  %950 = vmatpush1.msra.mxu0 0.0
  %951 = vmatprep.subr.mxu0 0.0
  %952 = vmatpush1.msra.mxu0 0.0
  %953 = vmatprep.subr.mxu0 0.0
  %954 = vmatpush1.msra.mxu0 0.0
  %955 = vmatprep.subr.mxu0 0.0
  %956 = vmatpush1.msra.mxu0 0.0
  %957 = vmatprep.subr.mxu0 0.0
  %958 = vmatpush1.msra.mxu0 0.0
  %959 = vmatprep.subr.mxu0 0.0
  %960 = vmatpush1.msra.mxu0 %v851
  %961 = vmatprep.subr.mxu0 0.0
  %962 = vmatpush1.msra.mxu0 %v846
  %963 = vmatprep.subr.mxu0 0.0
  %964 = vmatpush2.msra.mxu0 0.0
  %965 = vmatprep.subr.mxu0 0.0
  %966 = vmatpush2.msra.mxu0 0.0
  %967 = vmatprep.subr.mxu0 0.0
  %968 = vmatpush2.msra.mxu0 0.0
  %969 = vmatprep.subr.mxu0 0.0
  %970 = vmatpush2.msra.mxu0 0.0
  %971 = vmatprep.subr.mxu0 0.0
  %972 = vmatpush2.msra.mxu0 0.0
  %973 = vmatprep.subr.mxu0 0.0
  %974 = vmatpush2.msra.mxu0 0.0
  %975 = vmatprep.subr.mxu0 0.0
  %976 = vmatpush2.msra.mxu0 0.0
  %977 = vmatprep.subr.mxu0 0.0
  %978 = vmatpush2.msra.mxu0 0.0
  %979 = vmatprep.subr.mxu0 0.0
  %980 = vmatpush2.msra.mxu0 0.0
  %981 = vmatprep.subr.mxu0 0.0
  %982 = vmatpush2.msra.mxu0 0.0
  %983 = vmatprep.subr.mxu0 0.0
  %984 = vmatpush2.msra.mxu0 0.0
  %985 = vmatprep.subr.mxu0 0.0
  %986 = vmatpush2.msra.mxu0 0.0
  %987 = vmatprep.subr.mxu0 0.0
  %988 = vmatpush2.msra.mxu0 0.0
  %989 = vmatprep.subr.mxu0 0.0
  %990 = vmatpush2.msra.mxu0 0.0
  %991 = vmatprep.subr.mxu0 0.0
  %992 = vmatpush2.msra.mxu0 0.0
  %993 = vmatprep.subr.mxu0 0.0
  %994 = vmatpush2.msra.mxu0 0.0
  %995 = vmatprep.mubr.f32.mxu0 0.0
  %996 = vmatmul.mubr.f32.gmra.mxu0 %v278
  %v997 = vpop.f32.mrf.mxu0
  %v998 = vadd.f32 0.0, %v997
  %v999 = vpop.f32.mrf.mxu0
  %1000 = vmatprep.mubr.f32.mxu0 0.0
  %1001 = vmatmul.mubr.f32.gmra.mxu0 %v281
  %v1002 = vpop.f32.mrf.mxu0
  %v1003 = vadd.f32 0.0, %v1002
  %v1004 = vpop.f32.mrf.mxu0
  %1005 = vdwg.mxu0
  %v1006 = vmax.f32 %v998, 0.0
  %v1007 = vmax.f32 %v1003, 0.0
  %v1008 = vadd.f32 %v929, %v1006
  %v1009 = vadd.f32 %v930, %v1007
  %v1010 = vmul.f32 %v1008, 0.5
  %v1011 = vmul.f32 %v1009, 0.5
  %v1012 = vsel %vm31, %v1010, 0.0
  %v1013 = vrot.slane %v1012, 4
  %v1014 = vadd.f32 %v1012, %v1013
  %v1015 = vrot.slane %v1014, 2
  %v1016 = vadd.f32 %v1014, %v1015
  %v1017 = vrot.slane %v1016, 1
  %v1018 = vadd.f32 %v1016, %v1017
  %v1019 = vsel %vm31, %v1011, 0.0
  %v1020 = vrot.slane %v1019, 4
  %v1021 = vadd.f32 %v1019, %v1020
  %v1022 = vrot.slane %v1021, 2
  %v1023 = vadd.f32 %v1021, %v1022
  %v1024 = vrot.slane %v1023, 1
  %v1025 = vadd.f32 %v1023, %v1024
  %v1026 = vmul.f32 %v1018, 0.125
  %v1027 = vmul.f32 %v1025, 0.125
  %v1028 = vld [vmem:[%s0 + $0x10] sm:$0x3]
  %v1029 = vld [vmem:[%s3] sm:$0xff]
  %v1030 = vld [vmem:[%s3 + $0x8] sm:$0xff]
  %v1031 = vld [vmem:[%s3 + $0x10] sm:$0xff]
  %v1032 = vld [vmem:[%s3 + $0x18] sm:$0xff]
  %v1033 = vld [vmem:[%s3 + $0x20] sm:$0x1]
  %v1034 = vlaneseq
  %v1035 = vshrl.u32 %v1034, 7
  %v1036 = vsub.s32 0, %v1035
  %v1037 = vrot.slane %v1033, %v1036
  %v1039 = vsel %vm31, %v1028, 0
  %1041 = vmatprep.subr.mxu0 0.0
  %1042 = vmatpush1.msra.mxu0 0.0
  %1043 = vmatprep.subr.mxu0 0.0
  %1044 = vmatpush1.msra.mxu0 0.0
  %1045 = vmatprep.subr.mxu0 0.0
  %1046 = vmatpush1.msra.mxu0 0.0
  %1047 = vmatprep.subr.mxu0 0.0
  %1048 = vmatpush1.msra.mxu0 0.0
  %1049 = vmatprep.subr.mxu0 0.0
  %1050 = vmatpush1.msra.mxu0 0.0
  %1051 = vmatprep.subr.mxu0 0.0
  %1052 = vmatpush1.msra.mxu0 0.0
  %1053 = vmatprep.subr.mxu0 0.0
  %1054 = vmatpush1.msra.mxu0 0.0
  %1055 = vmatprep.subr.mxu0 0.0
  %1056 = vmatpush1.msra.mxu0 0.0
  %1057 = vmatprep.subr.mxu0 0.0
  %1058 = vmatpush1.msra.mxu0 0.0
  %1059 = vmatprep.subr.mxu0 0.0
  %1060 = vmatpush1.msra.mxu0 0.0
  %1061 = vmatprep.subr.mxu0 0.0
  %1062 = vmatpush1.msra.mxu0 0.0
  %1063 = vmatprep.subr.mxu0 0.0
  %1064 = vmatpush1.msra.mxu0 0.0
  %1065 = vmatprep.subr.mxu0 0.0
  %1066 = vmatpush1.msra.mxu0 %v1032
  %1067 = vmatprep.subr.mxu0 0.0
  %1068 = vmatpush1.msra.mxu0 %v1031
  %1069 = vmatprep.subr.mxu0 0.0
  %1070 = vmatpush1.msra.mxu0 %v1030
  %1071 = vmatprep.subr.mxu0 0.0
  %1072 = vmatpush1.msra.mxu0 %v1029
  %1073 = vmatprep.subr.mxu0 0.0
  %1074 = vmatpush2.msra.mxu0 0.0
  %1075 = vmatprep.subr.mxu0 0.0
  %1076 = vmatpush2.msra.mxu0 0.0
  %1077 = vmatprep.subr.mxu0 0.0
  %1078 = vmatpush2.msra.mxu0 0.0
  %1079 = vmatprep.subr.mxu0 0.0
  %1080 = vmatpush2.msra.mxu0 0.0
  %1081 = vmatprep.subr.mxu0 0.0
  %1082 = vmatpush2.msra.mxu0 0.0
  %1083 = vmatprep.subr.mxu0 0.0
  %1084 = vmatpush2.msra.mxu0 0.0
  %1085 = vmatprep.subr.mxu0 0.0
  %1086 = vmatpush2.msra.mxu0 0.0
  %1087 = vmatprep.subr.mxu0 0.0
  %1088 = vmatpush2.msra.mxu0 0.0
  %1089 = vmatprep.subr.mxu0 0.0
  %1090 = vmatpush2.msra.mxu0 0.0
  %1091 = vmatprep.subr.mxu0 0.0
  %1092 = vmatpush2.msra.mxu0 0.0
  %1093 = vmatprep.subr.mxu0 0.0
  %1094 = vmatpush2.msra.mxu0 0.0
  %1095 = vmatprep.subr.mxu0 0.0
  %1096 = vmatpush2.msra.mxu0 0.0
  %1097 = vmatprep.subr.mxu0 0.0
  %1098 = vmatpush2.msra.mxu0 0.0
  %1099 = vmatprep.subr.mxu0 0.0
  %1100 = vmatpush2.msra.mxu0 0.0
  %1101 = vmatprep.subr.mxu0 0.0
  %1102 = vmatpush2.msra.mxu0 0.0
  %1103 = vmatprep.subr.mxu0 0.0
  %1104 = vmatpush2.msra.mxu0 0.0
  %1105 = vmatprep.mubr.f32.mxu0 0.0
  %1106 = vmatmul.mubr.f32.gmra.mxu0 %v1039
  %v1107 = vpop.f32.mrf.mxu0
  %v1108 = vadd.f32 %v1037, %v1107
  %v1109 = vpop.f32.mrf.mxu0
  %1110 = vdwg.mxu0
  %v1111 = vxor.u32 %v1108, 2147483648
  %v1112 = vmul.f32 %v1111, 1.442695
  %v1113 = vpow.pop %v1112
  %v1114 = vadd.f32 %v1113, 1.0
  %v1115 = vrcp.pop %v1114
  %v1116 = vmul.f32 1.0, %v1115
  %v1117 = vmul.f32 %v1108, %v1116
  %v1118 = vld [vmem:[%s4] sm:$0xff]
  %v1119 = vld [vmem:[%s4 + $0x8] sm:$0xff]
  %v1120 = vld [vmem:[%s4 + $0x10] sm:$0xff]
  %v1121 = vld [vmem:[%s4 + $0x18] sm:$0xff]
  %v1122 = vld [vmem:[%s4 + $0x20] sm:$0xff]
  %v1123 = vld [vmem:[%s4 + $0x28] sm:$0xff]
  %v1124 = vld [vmem:[%s4 + $0x30] sm:$0xff]
  %v1125 = vld [vmem:[%s4 + $0x38] sm:$0xff]
  %v1126 = vld [vmem:[%s4 + $0x40] sm:$0xff]
  %v1127 = vld [vmem:[%s4 + $0x48] sm:$0xff]
  %v1128 = vld [vmem:[%s4 + $0x50] sm:$0xff]
  %v1129 = vld [vmem:[%s4 + $0x58] sm:$0xff]
  %v1130 = vld [vmem:[%s4 + $0x60] sm:$0xff]
  %v1131 = vld [vmem:[%s4 + $0x68] sm:$0xff]
  %v1132 = vld [vmem:[%s4 + $0x70] sm:$0xff]
  %v1133 = vld [vmem:[%s4 + $0x78] sm:$0xff]
  %v1134 = vld [vmem:[%s4 + $0x80] sm:$0x1]
  %v1135 = vlaneseq
  %v1136 = vshrl.u32 %v1135, 7
  %v1137 = vsub.s32 0, %v1136
  %v1138 = vrot.slane %v1134, %v1137
  %1139 = vmatprep.subr.mxu0 0.0
  %1140 = vmatpush1.msra.mxu0 %v1133
  %1141 = vmatprep.subr.mxu0 0.0
  %1142 = vmatpush1.msra.mxu0 %v1132
  %1143 = vmatprep.subr.mxu0 0.0
  %1144 = vmatpush1.msra.mxu0 %v1131
  %1145 = vmatprep.subr.mxu0 0.0
  %1146 = vmatpush1.msra.mxu0 %v1130
  %1147 = vmatprep.subr.mxu0 0.0
  %1148 = vmatpush1.msra.mxu0 %v1129
  %1149 = vmatprep.subr.mxu0 0.0
  %1150 = vmatpush1.msra.mxu0 %v1128
  %1151 = vmatprep.subr.mxu0 0.0
  %1152 = vmatpush1.msra.mxu0 %v1127
  %1153 = vmatprep.subr.mxu0 0.0
  %1154 = vmatpush1.msra.mxu0 %v1126
  %1155 = vmatprep.subr.mxu0 0.0
  %1156 = vmatpush1.msra.mxu0 %v1125
  %1157 = vmatprep.subr.mxu0 0.0
  %1158 = vmatpush1.msra.mxu0 %v1124
  %1159 = vmatprep.subr.mxu0 0.0
  %1160 = vmatpush1.msra.mxu0 %v1123
  %1161 = vmatprep.subr.mxu0 0.0
  %1162 = vmatpush1.msra.mxu0 %v1122
  %1163 = vmatprep.subr.mxu0 0.0
  %1164 = vmatpush1.msra.mxu0 %v1121
  %1165 = vmatprep.subr.mxu0 0.0
  %1166 = vmatpush1.msra.mxu0 %v1120
  %1167 = vmatprep.subr.mxu0 0.0
  %1168 = vmatpush1.msra.mxu0 %v1119
  %1169 = vmatprep.subr.mxu0 0.0
  %1170 = vmatpush1.msra.mxu0 %v1118
  %1171 = vmatprep.subr.mxu0 0.0
  %1172 = vmatpush2.msra.mxu0 0.0
  %1173 = vmatprep.subr.mxu0 0.0
  %1174 = vmatpush2.msra.mxu0 0.0
  %1175 = vmatprep.subr.mxu0 0.0
  %1176 = vmatpush2.msra.mxu0 0.0
  %1177 = vmatprep.subr.mxu0 0.0
  %1178 = vmatpush2.msra.mxu0 0.0
  %1179 = vmatprep.subr.mxu0 0.0
  %1180 = vmatpush2.msra.mxu0 0.0
  %1181 = vmatprep.subr.mxu0 0.0
  %1182 = vmatpush2.msra.mxu0 0.0
  %1183 = vmatprep.subr.mxu0 0.0
  %1184 = vmatpush2.msra.mxu0 0.0
  %1185 = vmatprep.subr.mxu0 0.0
  %1186 = vmatpush2.msra.mxu0 0.0
  %1187 = vmatprep.subr.mxu0 0.0
  %1188 = vmatpush2.msra.mxu0 0.0
  %1189 = vmatprep.subr.mxu0 0.0
  %1190 = vmatpush2.msra.mxu0 0.0
  %1191 = vmatprep.subr.mxu0 0.0
  %1192 = vmatpush2.msra.mxu0 0.0
  %1193 = vmatprep.subr.mxu0 0.0
  %1194 = vmatpush2.msra.mxu0 0.0
  %1195 = vmatprep.subr.mxu0 0.0
  %1196 = vmatpush2.msra.mxu0 0.0
  %1197 = vmatprep.subr.mxu0 0.0
  %1198 = vmatpush2.msra.mxu0 0.0
  %1199 = vmatprep.subr.mxu0 0.0
  %1200 = vmatpush2.msra.mxu0 0.0
  %1201 = vmatprep.subr.mxu0 0.0
  %1202 = vmatpush2.msra.mxu0 0.0
  %1203 = vmatprep.mubr.f32.mxu0 0.0
  %1204 = vmatmul.mubr.f32.gmra.mxu0 %v1117
  %v1205 = vpop.f32.mrf.mxu0
  %v1206 = vadd.f32 %v1138, %v1205
  %v1207 = vpop.f32.mrf.mxu0
  %1208 = vdwg.mxu0
  %v1210 = vrot.slane %v1206, 1
  %v1213 = vadd.f32 %v1026, %v1206
  %v1214 = vadd.f32 %v1027, %v1210
  %v1215 = vld [vmem:[%s4 + $0x81] sm:$0x1]
  %v1216 = vlaneseq
  %v1217 = vshrl.u32 %v1216, 7
  %v1218 = vsub.s32 0, %v1217
  %v1219 = vrot.slane %v1215, %v1218
  %v1220 = vmul.f32 %v1213, %v1219
  %v1221 = vmul.f32 %v1214, %v1219
  %v1224 = vrot.slane %v1221, 7
  %vm1225 = vcmask 1041409
  %v1226 = vsel %vm1225, %v1224, %v1220
  %vm1228 = vcmask 254976
  %v1229 = vsel %vm1228, %v1226, 0.0
  %1230 = vadd.xlane.f32.xlu0 %v1229
  %v1231 = vpop.xlane.xlu0 %1230
  %vm1232 = vcmask 1024
  %1233 = vst.msk [vmem:[%s5] sm:$0x3] %vm1232, %v1231
  // Predicated region
  $region22: #{neural_predictor.1} parent=0 // pred_check
    _
  $region23: #{neural_predictor.1} parent=0 // pred_check_branch
    %1235 = sbr.rel (0) target = $region25
  $region24: #{neural_predictor.1} parent=0 // pred_region
    _
  $region25: #{neural_predictor.1} parent=0 // pred_fallthru
    _
  // Predicated region
  $region26: #{neural_predictor.1} parent=0 // pred_check
    _
  $region27: #{neural_predictor.1} parent=0 // pred_check_branch
    %1237 = sbr.rel (0) target = $region29
  $region28: #{neural_predictor.1} parent=0 // pred_region
    _
  $region29: #{neural_predictor.1} parent=0 // pred_fallthru
    _

</llo_original>
